<compile_context>
chip_gen: v5e
topology: v5e:2x2
jax: 0.10.0
libtpu: 0.0.40
codegen_flags: <defaults>
</compile_context>

<pallas_src>
import jax
import jax.numpy as jnp
from jax.experimental import pallas as pl
from jax.experimental.pallas import tpu as pltpu


_SQRT_HALF = 0.7071067811865476


def _erf_approx(z):
    """Abramowitz & Stegun 7.1.26 erf approximation (max abs err ~1.5e-7)."""
    a1, a2, a3, a4, a5 = (0.254829592, -0.284496736, 1.421413741,
                          -1.453152027, 1.061405429)
    p = 0.3275911
    sgn = jnp.where(z >= 0.0, 1.0, -1.0)
    za = jnp.abs(z)
    t = 1.0 / (1.0 + p * za)
    poly = ((((a5 * t + a4) * t + a3) * t + a2) * t + a1) * t
    return sgn * (1.0 - poly * jnp.exp(-za * za))


def _gelu_exact(x):
    """Exact (erf-based) GELU, matching PyTorch nn.GELU() default."""
    return 0.5 * x * (1.0 + _erf_approx(x * _SQRT_HALF))


# ----------------------------------------------------------------------------
# Fused Mlp kernel: fc1 + bias + GELU + fc2 + bias in one pass.
# ----------------------------------------------------------------------------
def _mlp_kernel(x_ref, w1_ref, b1_ref, w2_ref, b2_ref, o_ref):
    # x_ref : (TM, Din)    token tile
    # w1_ref: (Din, H)     fc1 weight   b1_ref: (1, H)     fc1 bias
    # w2_ref: (H, Dout)    fc2 weight   b2_ref: (1, Dout)  fc2 bias
    # o_ref : (TM, Dout)
    h = jnp.dot(x_ref[...], w1_ref[...], preferred_element_type=jnp.float32)
    h = h + b1_ref[...]
    h = _gelu_exact(h)
    # Dropout(p=0.0) == identity (module default and eval mode).
    o = jnp.dot(h.astype(w2_ref.dtype), w2_ref[...],
                preferred_element_type=jnp.float32)
    o = o + b2_ref[...]
    o_ref[...] = o.astype(o_ref.dtype)


def _pick_token_tile(m, block_rows):
    """Largest sensible sublane-aligned token tile; >=2 blocks when possible."""
    tm = min(block_rows, m)
    if m > 8 and pl.cdiv(m, tm) < 2:
        # Split so both TensorCores (megacore) get at least one block.
        tm = max(8, pl.cdiv(m, 2))
    if tm < m:  # multiple blocks -> tile must be a multiple of 8 (sublanes)
        tm = ((tm + 7) // 8) * 8
    return tm


def mlp_forward(x, params, *, block_rows=256):
    """Fused Mlp forward.  x: (..., Din) -> (..., Dout)."""
    w1 = params["w1"]
    b1 = params["b1"]
    w2 = params["w2"]
    b2 = params["b2"]
    din, hidden = w1.shape
    dout = w2.shape[1]
    assert x.shape[-1] == din

    lead = x.shape[:-1]
    x2 = x.reshape(-1, din)
    m = x2.shape[0]

    tm = _pick_token_tile(m, block_rows)
    m_pad = pl.cdiv(m, tm) * tm
    if m_pad != m:
        x2 = jnp.pad(x2, ((0, m_pad - m), (0, 0)))

    b1_r = b1.reshape(1, hidden).astype(jnp.float32)
    b2_r = b2.reshape(1, dout).astype(jnp.float32)

    out = pl.pallas_call(
        _mlp_kernel,
        out_shape=jax.ShapeDtypeStruct((m_pad, dout), x.dtype),
        grid=(m_pad // tm,),
        in_specs=[
            pl.BlockSpec((tm, din), lambda i: (i, 0)),
            pl.BlockSpec((din, hidden), lambda i: (0, 0)),
            pl.BlockSpec((1, hidden), lambda i: (0, 0)),
            pl.BlockSpec((hidden, dout), lambda i: (0, 0)),
            pl.BlockSpec((1, dout), lambda i: (0, 0)),
        ],
        out_specs=pl.BlockSpec((tm, dout), lambda i: (i, 0)),
        compiler_params=pltpu.CompilerParams(
            dimension_semantics=("parallel",),
            vmem_limit_bytes=64 << 20),
    )(x2, w1, b1_r, w2, b2_r)

    if m_pad != m:
        out = out[:m]
    return out.reshape(lead + (dout,))


# ----------------------------------------------------------------------------
if __name__ == "__main__":
    key = jax.random.PRNGKey(0)
    k_x, k_w1, k_b1, k_w2, k_b2 = jax.random.split(key, 5)

    # Small, lane-dense shapes consistent with a Swin Mlp block:
    #   tokens = batch * seq,  hidden ~ mlp_ratio * in_features.
    B, L = 2, 64
    in_features, hidden_features, out_features = 128, 256, 128

    x = jax.random.normal(k_x, (B, L, in_features), jnp.float32)
    params = {
        "w1": jax.random.normal(k_w1, (in_features, hidden_features),
                                jnp.float32) / jnp.sqrt(float(in_features)),
        "b1": 0.1 * jax.random.normal(k_b1, (hidden_features,), jnp.float32),
        "w2": jax.random.normal(k_w2, (hidden_features, out_features),
                                jnp.float32) / jnp.sqrt(float(hidden_features)),
        "b2": 0.1 * jax.random.normal(k_b2, (out_features,), jnp.float32),
    }

    out = jax.block_until_ready(mlp_forward(x, params))
    assert out.shape == (B, L, out_features), out.shape
    assert bool(jnp.all(jnp.isfinite(out)))

    # Pure-JAX reference: Linear -> exact GELU -> Linear (dropout p=0 = id).
    h_ref = jax.nn.gelu(x @ params["w1"] + params["b1"], approximate=False)
    ref = h_ref @ params["w2"] + params["b2"]
    max_err = float(jnp.max(jnp.abs(out - ref)))
    assert jnp.allclose(out, ref, atol=1e-3, rtol=1e-3), max_err

    # TODO(synk): training-mode Dropout with p > 0 (stateful RNG masking via
    # pltpu.prng_seed / prng_random_bits) is not implemented; module default
    # drop=0.0 makes it the identity.
    print("KERNEL_OK")
</pallas_src>

<mosaic_0001>
module attributes {stable_mosaic.version = 11 : i64} {
  func.func @_mlp_kernel(%arg0: i32, %arg1: memref<64x128xf32, #tpu.memory_space<vmem>>, %arg2: memref<128x256xf32, #tpu.memory_space<vmem>>, %arg3: memref<1x256xf32, #tpu.memory_space<vmem>>, %arg4: memref<256x128xf32, #tpu.memory_space<vmem>>, %arg5: memref<1x128xf32, #tpu.memory_space<vmem>>, %arg6: memref<64x128xf32, #tpu.memory_space<vmem>>) attributes {dimension_semantics = [#tpu.dimension_semantics<parallel>], iteration_bounds = array<i64: 2>, scalar_prefetch = 0 : i64, scratch_operands = 0 : i64, tpu.core_type = #tpu.core_type<tc>, window_params = [{transform_indices = @transform_0, window_bounds = array<i64: 64, 128>}, {pipeline_mode = #tpu.pipeline_mode<synchronous>, transform_indices = @transform_1, window_bounds = array<i64: 128, 256>}, {pipeline_mode = #tpu.pipeline_mode<synchronous>, transform_indices = @transform_2, window_bounds = array<i64: 1, 256>}, {pipeline_mode = #tpu.pipeline_mode<synchronous>, transform_indices = @transform_3, window_bounds = array<i64: 256, 128>}, {pipeline_mode = #tpu.pipeline_mode<synchronous>, transform_indices = @transform_4, window_bounds = array<i64: 1, 128>}, {transform_indices = @transform_5, window_bounds = array<i64: 64, 128>}]} {
    %c0 = arith.constant 0 : index
    %c0_0 = arith.constant 0 : index
    %0 = vector.load %arg1[%c0, %c0_0] : memref<64x128xf32, #tpu.memory_space<vmem>>, vector<64x128xf32>
    %c0_1 = arith.constant 0 : index
    %c0_2 = arith.constant 0 : index
    %1 = vector.load %arg2[%c0_1, %c0_2] : memref<128x256xf32, #tpu.memory_space<vmem>>, vector<128x256xf32>
    %cst = arith.constant dense<0.000000e+00> : vector<64x256xf32>
    %2 = tpu.matmul %0, %1, %cst {dimension_numbers = #tpu.dot_dimension_numbers<[1], [0], [0], [1], [0, 0, 1, 1], [], []>} : vector<64x128xf32>, vector<128x256xf32>, vector<64x256xf32> -> vector<64x256xf32>
    %c0_3 = arith.constant 0 : index
    %c0_4 = arith.constant 0 : index
    %3 = vector.load %arg3[%c0_3, %c0_4] : memref<1x256xf32, #tpu.memory_space<vmem>>, vector<1x256xf32>
    %4 = vector.broadcast %3 : vector<1x256xf32> to vector<64x256xf32>
    %5 = arith.addf %2, %4 : vector<64x256xf32>
    %cst_5 = arith.constant 5.000000e-01 : f32
    %6 = vector.broadcast %cst_5 : f32 to vector<64x256xf32>
    %7 = arith.mulf %6, %5 : vector<64x256xf32>
    %cst_6 = arith.constant 0.707106769 : f32
    %8 = vector.broadcast %cst_6 : f32 to vector<64x256xf32>
    %9 = arith.mulf %5, %8 : vector<64x256xf32>
    %cst_7 = arith.constant 0.000000e+00 : f32
    %10 = vector.broadcast %cst_7 : f32 to vector<64x256xf32>
    %11 = arith.cmpf oge, %9, %10 : vector<64x256xf32>
    %cst_8 = arith.constant 1.000000e+00 : f32
    %cst_9 = arith.constant -1.000000e+00 : f32
    %12 = vector.broadcast %cst_8 : f32 to vector<64x256xf32>
    %13 = vector.broadcast %cst_9 : f32 to vector<64x256xf32>
    %14 = arith.select %11, %12, %13 : vector<64x256xi1>, vector<64x256xf32>
    %15 = math.absf %9 : vector<64x256xf32>
    %cst_10 = arith.constant 0.327591091 : f32
    %16 = vector.broadcast %cst_10 : f32 to vector<64x256xf32>
    %17 = arith.mulf %16, %15 : vector<64x256xf32>
    %cst_11 = arith.constant 1.000000e+00 : f32
    %18 = vector.broadcast %cst_11 : f32 to vector<64x256xf32>
    %19 = arith.addf %18, %17 : vector<64x256xf32>
    %cst_12 = arith.constant 1.000000e+00 : f32
    %20 = vector.broadcast %cst_12 : f32 to vector<64x256xf32>
    %21 = arith.divf %20, %19 : vector<64x256xf32>
    %cst_13 = arith.constant 1.06140542 : f32
    %22 = vector.broadcast %cst_13 : f32 to vector<64x256xf32>
    %23 = arith.mulf %22, %21 : vector<64x256xf32>
    %cst_14 = arith.constant -1.45315206 : f32
    %24 = vector.broadcast %cst_14 : f32 to vector<64x256xf32>
    %25 = arith.addf %23, %24 : vector<64x256xf32>
    %26 = arith.mulf %25, %21 : vector<64x256xf32>
    %cst_15 = arith.constant 1.42141378 : f32
    %27 = vector.broadcast %cst_15 : f32 to vector<64x256xf32>
    %28 = arith.addf %26, %27 : vector<64x256xf32>
    %29 = arith.mulf %28, %21 : vector<64x256xf32>
    %cst_16 = arith.constant -0.284496725 : f32
    %30 = vector.broadcast %cst_16 : f32 to vector<64x256xf32>
    %31 = arith.addf %29, %30 : vector<64x256xf32>
    %32 = arith.mulf %31, %21 : vector<64x256xf32>
    %cst_17 = arith.constant 0.254829586 : f32
    %33 = vector.broadcast %cst_17 : f32 to vector<64x256xf32>
    %34 = arith.addf %32, %33 : vector<64x256xf32>
    %35 = arith.mulf %34, %21 : vector<64x256xf32>
    %cst_18 = arith.constant 0.000000e+00 : f32
    %36 = vector.broadcast %cst_18 : f32 to vector<64x256xf32>
    %37 = arith.subf %36, %15 : vector<64x256xf32>
    %38 = arith.mulf %37, %15 : vector<64x256xf32>
    %39 = math.exp %38 : vector<64x256xf32>
    %40 = arith.mulf %35, %39 : vector<64x256xf32>
    %cst_19 = arith.constant 1.000000e+00 : f32
    %41 = vector.broadcast %cst_19 : f32 to vector<64x256xf32>
    %42 = arith.subf %41, %40 : vector<64x256xf32>
    %43 = arith.mulf %14, %42 : vector<64x256xf32>
    %cst_20 = arith.constant 1.000000e+00 : f32
    %44 = vector.broadcast %cst_20 : f32 to vector<64x256xf32>
    %45 = arith.addf %44, %43 : vector<64x256xf32>
    %46 = arith.mulf %7, %45 : vector<64x256xf32>
    %c0_21 = arith.constant 0 : index
    %c0_22 = arith.constant 0 : index
    %47 = vector.load %arg4[%c0_21, %c0_22] : memref<256x128xf32, #tpu.memory_space<vmem>>, vector<256x128xf32>
    %cst_23 = arith.constant dense<0.000000e+00> : vector<64x128xf32>
    %48 = tpu.matmul %46, %47, %cst_23 {dimension_numbers = #tpu.dot_dimension_numbers<[1], [0], [0], [1], [0, 0, 1, 1], [], []>} : vector<64x256xf32>, vector<256x128xf32>, vector<64x128xf32> -> vector<64x128xf32>
    %c0_24 = arith.constant 0 : index
    %c0_25 = arith.constant 0 : index
    %49 = vector.load %arg5[%c0_24, %c0_25] : memref<1x128xf32, #tpu.memory_space<vmem>>, vector<1x128xf32>
    %50 = vector.broadcast %49 : vector<1x128xf32> to vector<64x128xf32>
    %51 = arith.addf %48, %50 : vector<64x128xf32>
    %c0_26 = arith.constant 0 : index
    %c0_27 = arith.constant 0 : index
    %52 = vector.load %arg6[%c0_26, %c0_27] : memref<64x128xf32, #tpu.memory_space<vmem>>, vector<64x128xf32>
    tpu.vector_store %arg6[%c0_26, %c0_27], %51 {strides = array<i32>} : memref<64x128xf32, #tpu.memory_space<vmem>>, vector<64x128xf32>,
    return
  }
  func.func @transform_0(%arg0: i32) -> (i32, i32) {
    %c0_i32 = arith.constant 0 : i32
    %c0_i32_0 = arith.constant 0 : i32
    return %arg0, %c0_i32 : i32, i32
  }
  func.func @transform_1(%arg0: i32) -> (i32, i32) {
    %c0_i32 = arith.constant 0 : i32
    %c0_i32_0 = arith.constant 0 : i32
    %c0_i32_1 = arith.constant 0 : i32
    return %c0_i32, %c0_i32_0 : i32, i32
  }
  func.func @transform_2(%arg0: i32) -> (i32, i32) {
    %c0_i32 = arith.constant 0 : i32
    %c0_i32_0 = arith.constant 0 : i32
    %c0_i32_1 = arith.constant 0 : i32
    return %c0_i32, %c0_i32_0 : i32, i32
  }
  func.func @transform_3(%arg0: i32) -> (i32, i32) {
    %c0_i32 = arith.constant 0 : i32
    %c0_i32_0 = arith.constant 0 : i32
    %c0_i32_1 = arith.constant 0 : i32
    return %c0_i32, %c0_i32_0 : i32, i32
  }
  func.func @transform_4(%arg0: i32) -> (i32, i32) {
    %c0_i32 = arith.constant 0 : i32
    %c0_i32_0 = arith.constant 0 : i32
    %c0_i32_1 = arith.constant 0 : i32
    return %c0_i32, %c0_i32_0 : i32, i32
  }
  func.func @transform_5(%arg0: i32) -> (i32, i32) {
    %c0_i32 = arith.constant 0 : i32
    %c0_i32_0 = arith.constant 0 : i32
    return %arg0, %c0_i32 : i32, i32
  }
}

</mosaic_0001>

<llo_original>
// kernel: tpu_custom_call.1
$region0: #{tpu_custom_call.1}
  #allocation0 [shape = 'u32[]', space=smem, size = 0x4, offset = 0x4, fixed_abs, tag = 'smem constant byte address 0x4 - core index']
  #allocation1 [shape = 'u32[72,128]{1,0:T(1,128)}', space=vmem, size = 0x9000, scoped, tag = 'internal scratch']
  %s0 = inlined_call_operand.hbm [shape: f32[128,128], index: 0, kind: input, shape index: {}]
  %s1 = inlined_call_operand.hbm [shape: f32[128,256], index: 1, kind: input, shape index: {}]
  %s2 = inlined_call_operand.hbm [shape: f32[1,256], index: 2, kind: input, shape index: {}]
  %s3 = inlined_call_operand.hbm [shape: f32[256,128], index: 3, kind: input, shape index: {}]
  %s4 = inlined_call_operand.vmem [shape: f32[1,128], index: 4, kind: input, shape index: {}]
  %s5 = inlined_call_operand.hbm [shape: f32[128,128], index: 5, kind: output, shape index: {}]
  %s6 = sld [smem:[#allocation0]]
  $region69: #{tpu_custom_call.1} parent=0
    _
  %s8 = ssub.s32 1, %s6
  %s9 = scalar_select 0, %s8, %s6
  $region1: #{tpu_custom_call.1} parent=0
    #allocation2 [shape = 'u8[65536]{0}', space=vmem, size = 0x10000, scoped, tag = 'input window, operand 0']
    #allocation3 [shape = 's32[2]{0}', space=sflag, size = 0x8, scoped, tag = 'scoped memory for tpu_custom_call.1']
    #allocation4 [shape = 's32[2]{0}', space=sflag, size = 0x8, scoped, tag = 'scoped memory for tpu_custom_call.1']
    #allocation5 [shape = 'u8[131072]{0}', space=vmem, size = 0x20000, scoped, tag = 'input window, operand 1, single buffered']
    #allocation6 [shape = 's32[1]{0}', space=sflag, size = 0x4, scoped, tag = 'scoped memory for tpu_custom_call.1']
    #allocation7 [shape = 'u8[1024]{0}', space=vmem, size = 0x400, scoped, tag = 'input window, operand 2, single buffered']
    #allocation8 [shape = 'u8[131072]{0}', space=vmem, size = 0x20000, scoped, tag = 'input window, operand 3, single buffered']
    #allocation9 [shape = 's32[1]{0}', space=sflag, size = 0x4, scoped, tag = 'scoped memory for tpu_custom_call.1']
    #allocation10 [shape = 'u8[65536]{0}', space=vmem, size = 0x10000, scoped, tag = 'output window, operand 0']
    %10 = vsyncpa [#allocation3], 0
    %s11 = scalar_lea.sflag [#allocation3], 1
    %12 = vsyncpa %s11, 0
    %13 = vsyncpa [#allocation6], 0
    %14 = vsyncpa [#allocation9], 0
    %15 = vsyncpa [#allocation4], 0
    %s16 = scalar_lea.sflag [#allocation4], 1
    %17 = vsyncpa %s16, 0
    loop: start=0, step=1, limit=4
    $region2: #{tpu_custom_call.1} parent=1 // loop_pre_header
      _
    $region3: #{tpu_custom_call.1} parent=1 // loop_header
      %s19 = sphi 0, %s23
      %p20 = scmp.ge.s32.totalorder %s19, 4
      %s29 = sphi 0, %s31
      %s32 = sphi 0, %s29
      %s33 = sphi 0, %s32
      %s49 = sphi 0, %s33
      %s53 = sphi 0, %s53
      %s55 = sphi 0, %s53
      %s56 = sphi 0, %s55
      %s70 = sphi 0, %s56
      %s74 = sphi 0, %s74
      %s76 = sphi 0, %s74
      %s77 = sphi 0, %s76
      %s91 = sphi 0, %s77
      %s95 = sphi 0, %s95
      %s97 = sphi 0, %s95
      %s98 = sphi 0, %s97
      %s112 = sphi 0, %s98
      %s116 = sphi 0, %s116
      %s118 = sphi 0, %s116
      %s119 = sphi 0, %s118
      %s133 = sphi 0, %s119
      %s139 = sphi 0, %s141
      %s142 = sphi 0, %s139
      %s143 = sphi 0, %s142
      %s159 = sphi 0, %s143
    $region4: #{tpu_custom_call.1} parent=1 // loop_header_branch
      %22 = sbr.rel (%p20) target = $region8
    $region5: #{tpu_custom_call.1} parent=1 // loop_body
      %s24 = ssub.s32 %s19, 1
      %s25 = ssub.s32 %s19, 2
      %s26 = sadd.s32 %s19, 1
      %s27 = ssub.s32 %s19, %s26
      %p28 = scmp.eq.s32.totalorder %s27, 0
      %s30 = sadd.s32 %s29, 1
      %s31 = scalar_select %p28, %s29, %s30
      %p34 = pneg %p28
      %p35 = scmp.eq.s32.totalorder %s19, 1
      %p36 = por %p34, %p35
      %p37 = scmp.ne.s32.totalorder %s29, %s32
      %p38 = scmp.eq.s32.totalorder %s19, 0
      %p39 = por %p37, %p38
      %p40 = scmp.ne.s32.totalorder %s29, %s32
      %p41 = scmp.eq.s32.totalorder %s24, 1
      %p42 = por %p40, %p41
      %p43 = scmp.ne.s32.totalorder %s32, %s33
      %p44 = scmp.eq.s32.totalorder %s24, 0
      %p45 = por %p43, %p44
      %p46 = scmp.ne.s32.totalorder %s32, %s33
      %p47 = scmp.eq.s32.totalorder %s25, 1
      %p48 = por %p46, %p47
      %p50 = scmp.ne.s32.totalorder %s33, %s49
      %p51 = scmp.eq.s32.totalorder %s25, 0
      %p52 = por %p50, %p51
      %s54 = sadd.s32 %s53, 1
      %p57 = scmp.eq.s32.totalorder %s19, 1
      %p58 = scmp.ne.s32.totalorder %s53, %s55
      %p59 = scmp.eq.s32.totalorder %s19, 0
      %p60 = por %p58, %p59
      %p61 = scmp.ne.s32.totalorder %s53, %s55
      %p62 = scmp.eq.s32.totalorder %s24, 1
      %p63 = por %p61, %p62
      %p64 = scmp.ne.s32.totalorder %s55, %s56
      %p65 = scmp.eq.s32.totalorder %s24, 0
      %p66 = por %p64, %p65
      %p67 = scmp.ne.s32.totalorder %s55, %s56
      %p68 = scmp.eq.s32.totalorder %s25, 1
      %p69 = por %p67, %p68
      %p71 = scmp.ne.s32.totalorder %s56, %s70
      %p72 = scmp.eq.s32.totalorder %s25, 0
      %p73 = por %p71, %p72
      %s75 = sadd.s32 %s74, 1
      %p78 = scmp.eq.s32.totalorder %s19, 1
      %p79 = scmp.ne.s32.totalorder %s74, %s76
      %p80 = scmp.eq.s32.totalorder %s19, 0
      %p81 = por %p79, %p80
      %p82 = scmp.ne.s32.totalorder %s74, %s76
      %p83 = scmp.eq.s32.totalorder %s24, 1
      %p84 = por %p82, %p83
      %p85 = scmp.ne.s32.totalorder %s76, %s77
      %p86 = scmp.eq.s32.totalorder %s24, 0
      %p87 = por %p85, %p86
      %p88 = scmp.ne.s32.totalorder %s76, %s77
      %p89 = scmp.eq.s32.totalorder %s25, 1
      %p90 = por %p88, %p89
      %p92 = scmp.ne.s32.totalorder %s77, %s91
      %p93 = scmp.eq.s32.totalorder %s25, 0
      %p94 = por %p92, %p93
      %s96 = sadd.s32 %s95, 1
      %p99 = scmp.eq.s32.totalorder %s19, 1
      %p100 = scmp.ne.s32.totalorder %s95, %s97
      %p101 = scmp.eq.s32.totalorder %s19, 0
      %p102 = por %p100, %p101
      %p103 = scmp.ne.s32.totalorder %s95, %s97
      %p104 = scmp.eq.s32.totalorder %s24, 1
      %p105 = por %p103, %p104
      %p106 = scmp.ne.s32.totalorder %s97, %s98
      %p107 = scmp.eq.s32.totalorder %s24, 0
      %p108 = por %p106, %p107
      %p109 = scmp.ne.s32.totalorder %s97, %s98
      %p110 = scmp.eq.s32.totalorder %s25, 1
      %p111 = por %p109, %p110
      %p113 = scmp.ne.s32.totalorder %s98, %s112
      %p114 = scmp.eq.s32.totalorder %s25, 0
      %p115 = por %p113, %p114
      %s117 = sadd.s32 %s116, 1
      %p120 = scmp.eq.s32.totalorder %s19, 1
      %p121 = scmp.ne.s32.totalorder %s116, %s118
      %p122 = scmp.eq.s32.totalorder %s19, 0
      %p123 = por %p121, %p122
      %p124 = scmp.ne.s32.totalorder %s116, %s118
      %p125 = scmp.eq.s32.totalorder %s24, 1
      %p126 = por %p124, %p125
      %p127 = scmp.ne.s32.totalorder %s118, %s119
      %p128 = scmp.eq.s32.totalorder %s24, 0
      %p129 = por %p127, %p128
      %p130 = scmp.ne.s32.totalorder %s118, %s119
      %p131 = scmp.eq.s32.totalorder %s25, 1
      %p132 = por %p130, %p131
      %p134 = scmp.ne.s32.totalorder %s119, %s133
      %p135 = scmp.eq.s32.totalorder %s25, 0
      %p136 = por %p134, %p135
      %s137 = ssub.s32 %s19, %s26
      %p138 = scmp.eq.s32.totalorder %s137, 0
      %s140 = sadd.s32 %s139, 1
      %s141 = scalar_select %p138, %s139, %s140
      %p144 = pneg %p138
      %p145 = scmp.eq.s32.totalorder %s19, 1
      %p146 = por %p144, %p145
      %p147 = scmp.ne.s32.totalorder %s139, %s142
      %p148 = scmp.eq.s32.totalorder %s19, 0
      %p149 = por %p147, %p148
      %p150 = scmp.ne.s32.totalorder %s139, %s142
      %p151 = scmp.eq.s32.totalorder %s24, 1
      %p152 = por %p150, %p151
      %p153 = scmp.ne.s32.totalorder %s142, %s143
      %p154 = scmp.eq.s32.totalorder %s24, 0
      %p155 = por %p153, %p154
      %p156 = scmp.ne.s32.totalorder %s142, %s143
      %p157 = scmp.eq.s32.totalorder %s25, 1
      %p158 = por %p156, %p157
      %p160 = scmp.ne.s32.totalorder %s143, %s159
      %p161 = scmp.eq.s32.totalorder %s25, 0
      %p162 = por %p160, %p161
      %p163 = scmp.le.s32.totalorder 1, %s19
      %p164 = scmp.lt.s32.totalorder %s19, 3
      %p165 = pnand %p163, %p164
      %p166 = pneg %p165
      // Predicated region
      $region9: #{tpu_custom_call.1} parent=5 // pred_check
        _
      $region10: #{tpu_custom_call.1} parent=5 // pred_check_branch
        %168 = sbr.rel (%p165) target = $region12
      $region11: #{tpu_custom_call.1} parent=5 // pred_region
        %s169 = ssub.s32 %s19, 1
        // Predicated region
        $region13: #{tpu_custom_call.1} parent=11 // pred_check
          %p170 = pneg %p66
        $region14: #{tpu_custom_call.1} parent=11 // pred_check_branch
          %172 = sbr.rel (%p170) target = $region16
        $region15: #{tpu_custom_call.1} parent=11 // pred_region
          %174 = vsyncadd [#allocation6], 0
          %s175 = sshll.u32 %s1, 4
          %s176 = int_to_ptr.hbm [resolvable:$true] %s175
          %s177 = sshll.u32 [#allocation5], 4
          %s178 = int_to_ptr.vmem [resolvable:$true] %s177
          %183 = dma.hbm_to_vmem [thread:$0]  %s176, 4096, %s178, [#allocation6], 256, 256, 16
        $region16: #{tpu_custom_call.1} parent=11 // pred_fallthru
          _
        // Predicated region
        $region17: #{tpu_custom_call.1} parent=11 // pred_check
          %p184 = pneg %p87
        $region18: #{tpu_custom_call.1} parent=11 // pred_check_branch
          %186 = sbr.rel (%p184) target = $region20
        $region19: #{tpu_custom_call.1} parent=11 // pred_region
          %188 = vsyncadd [#allocation6], 0
          %s190 = sshll.u32 %s2, 4
          %s191 = int_to_ptr.hbm [resolvable:$true] %s190
          %s192 = sshll.u32 [#allocation7], 4
          %s193 = int_to_ptr.vmem [resolvable:$true] %s192
          %195 = dma.hbm_to_vmem [thread:$0]  %s191, 32, %s193, [#allocation6]
        $region20: #{tpu_custom_call.1} parent=11 // pred_fallthru
          _
        // Predicated region
        $region21: #{tpu_custom_call.1} parent=11 // pred_check
          %p196 = pneg %p108
        $region22: #{tpu_custom_call.1} parent=11 // pred_check_branch
          %198 = sbr.rel (%p196) target = $region24
        $region23: #{tpu_custom_call.1} parent=11 // pred_region
          %200 = vsyncadd [#allocation9], 0
          %s201 = sshll.u32 %s3, 4
          %s202 = int_to_ptr.hbm [resolvable:$true] %s201
          %s203 = sshll.u32 [#allocation8], 4
          %s204 = int_to_ptr.vmem [resolvable:$true] %s203
          %209 = dma.hbm_to_vmem [thread:$0]  %s202, 4096, %s204, [#allocation9], 128, 128, 8
        $region24: #{tpu_custom_call.1} parent=11 // pred_fallthru
          _
        // Predicated region
        $region25: #{tpu_custom_call.1} parent=11 // pred_check
          %p210 = pneg %p129
        $region26: #{tpu_custom_call.1} parent=11 // pred_check_branch
          %212 = sbr.rel (%p210) target = $region28
        $region27: #{tpu_custom_call.1} parent=11 // pred_region
          _
        $region28: #{tpu_custom_call.1} parent=11 // pred_fallthru
          _
      $region12: #{tpu_custom_call.1} parent=5 // pred_fallthru
        _
      %p213 = scmp.lt.s32.totalorder %s19, 2
      // Predicated region
      $region29: #{tpu_custom_call.1} parent=5 // pred_check
        %p214 = pneg %p213
      $region30: #{tpu_custom_call.1} parent=5 // pred_check_branch
        %216 = sbr.rel (%p214) target = $region32
      $region31: #{tpu_custom_call.1} parent=5 // pred_region
        // Predicated region
        $region33: #{tpu_custom_call.1} parent=31 // pred_check
          %p217 = pneg %p39
        $region34: #{tpu_custom_call.1} parent=31 // pred_check_branch
          %219 = sbr.rel (%p217) target = $region36
        $region35: #{tpu_custom_call.1} parent=31 // pred_region
          %s220 = sand.u32 %s29, 1
          %s221 = scalar_lea.sflag [#allocation3], %s220
          %s222 = sand.u32 %s29, 1
          %s223 = smul.addr %s222, 64
          %s224 = scalar_lea.vmem [#allocation2], %s223
          %s225 = smul.u32 8, %s19
          %227 = vsyncadd %s221, 0
          %s228 = smul.addr %s225, 8
          %s229 = scalar_lea.hbm %s0, %s228
          %s230 = sshll.u32 %s229, 4
          %s231 = int_to_ptr.hbm [resolvable:$true] %s230
          %s232 = sshll.u32 %s224, 4
          %s233 = int_to_ptr.vmem [resolvable:$true] %s232
          %238 = dma.hbm_to_vmem [thread:$0]  %s231, 1024, %s233, %s221, 128, 128, 8
        $region36: #{tpu_custom_call.1} parent=31 // pred_fallthru
          _
      $region32: #{tpu_custom_call.1} parent=5 // pred_fallthru
        _
      %p239 = scmp.le.s32.totalorder 1, %s19
      %p240 = scmp.lt.s32.totalorder %s19, 3
      %p241 = pnand %p239, %p240
      %p242 = pneg %p241
      // Predicated region
      $region37: #{tpu_custom_call.1} parent=5 // pred_check
        _
      $region38: #{tpu_custom_call.1} parent=5 // pred_check_branch
        %244 = sbr.rel (%p241) target = $region40
      $region39: #{tpu_custom_call.1} parent=5 // pred_region
        %s245 = ssub.s32 %s19, 1
        %s246 = sand.u32 %s32, 1
        %s247 = scalar_lea.sflag [#allocation3], %s246
        %s248 = sand.u32 %s32, 1
        %s249 = smul.addr %s248, 64
        %s250 = scalar_lea.vmem [#allocation2], %s249
        // Predicated region
        $region41: #{tpu_custom_call.1} parent=39 // pred_check
          %p251 = pneg %p45
        $region42: #{tpu_custom_call.1} parent=39 // pred_check_branch
          %253 = sbr.rel (%p251) target = $region44
        $region43: #{tpu_custom_call.1} parent=39 // pred_region
          %255 = dma.done %s247, 1024
        $region44: #{tpu_custom_call.1} parent=39 // pred_fallthru
          _
        // Predicated region
        $region45: #{tpu_custom_call.1} parent=39 // pred_check
          %p256 = pneg %p66
        $region46: #{tpu_custom_call.1} parent=39 // pred_check_branch
          %258 = sbr.rel (%p256) target = $region48
        $region47: #{tpu_custom_call.1} parent=39 // pred_region
          %260 = dma.done [#allocation6], 4096
        $region48: #{tpu_custom_call.1} parent=39 // pred_fallthru
          _
        // Predicated region
        $region49: #{tpu_custom_call.1} parent=39 // pred_check
          %p261 = pneg %p87
        $region50: #{tpu_custom_call.1} parent=39 // pred_check_branch
          %263 = sbr.rel (%p261) target = $region52
        $region51: #{tpu_custom_call.1} parent=39 // pred_region
          %265 = dma.done [#allocation6], 32
        $region52: #{tpu_custom_call.1} parent=39 // pred_fallthru
          _
        // Predicated region
        $region53: #{tpu_custom_call.1} parent=39 // pred_check
          %p266 = pneg %p108
        $region54: #{tpu_custom_call.1} parent=39 // pred_check_branch
          %268 = sbr.rel (%p266) target = $region56
        $region55: #{tpu_custom_call.1} parent=39 // pred_region
          %270 = dma.done [#allocation9], 4096
        $region56: #{tpu_custom_call.1} parent=39 // pred_fallthru
          _
        %s271 = sand.u32 %s32, 1
        %s272 = scalar_lea.sflag [#allocation3], %s271
        %s273 = sand.u32 %s32, 1
        %s274 = smul.addr %s273, 64
        %s275 = scalar_lea.vmem [#allocation2], %s274
        %p276 = pneg %p45
        %p277 = pneg %p42
        %p278 = pneg %p66
        %p279 = pneg %p63
        %p280 = pneg %p87
        %p281 = pneg %p84
        %p282 = pneg %p108
        %p283 = pneg %p105
        %p284 = pneg %p129
        %p285 = pneg %p126
        %p286 = pneg %p155
        %p287 = pneg %p152
        %s288 = sand.u32 %s142, 1
        %s289 = scalar_lea.sflag [#allocation4], %s288
        %s290 = sand.u32 %s142, 1
        %s291 = smul.addr %s290, 64
        %s292 = scalar_lea.vmem [#allocation10], %s291
        %s293 = smul.u32 8, %s24
        %s294 = smul.u32 8, %s24
        %v295 = vld [vmem:[%s250] sm:$0xff]
        %v296 = vld [vmem:[%s250 + $0x8] sm:$0xff]
        %v297 = vld [vmem:[%s250 + $0x10] sm:$0xff]
        %v298 = vld [vmem:[%s250 + $0x18] sm:$0xff]
        %v299 = vld [vmem:[%s250 + $0x20] sm:$0xff]
        %v300 = vld [vmem:[%s250 + $0x28] sm:$0xff]
        %v301 = vld [vmem:[%s250 + $0x30] sm:$0xff]
        %v302 = vld [vmem:[%s250 + $0x38] sm:$0xff]
        %v303 = vld [vmem:[#allocation5] sm:$0xff]
        %v304 = vld [vmem:[#allocation5 + $0x8] sm:$0xff]
        %v305 = vld [vmem:[#allocation5 + $0x10] sm:$0xff]
        %v306 = vld [vmem:[#allocation5 + $0x18] sm:$0xff]
        %v307 = vld [vmem:[#allocation5 + $0x20] sm:$0xff]
        %v308 = vld [vmem:[#allocation5 + $0x28] sm:$0xff]
        %v309 = vld [vmem:[#allocation5 + $0x30] sm:$0xff]
        %v310 = vld [vmem:[#allocation5 + $0x38] sm:$0xff]
        %v311 = vld [vmem:[#allocation5 + $0x40] sm:$0xff]
        %v312 = vld [vmem:[#allocation5 + $0x48] sm:$0xff]
        %v313 = vld [vmem:[#allocation5 + $0x50] sm:$0xff]
        %v314 = vld [vmem:[#allocation5 + $0x58] sm:$0xff]
        %v315 = vld [vmem:[#allocation5 + $0x60] sm:$0xff]
        %v316 = vld [vmem:[#allocation5 + $0x68] sm:$0xff]
        %v317 = vld [vmem:[#allocation5 + $0x70] sm:$0xff]
        %v318 = vld [vmem:[#allocation5 + $0x78] sm:$0xff]
        %v319 = vld [vmem:[#allocation5 + $0x80] sm:$0xff]
        %v320 = vld [vmem:[#allocation5 + $0x88] sm:$0xff]
        %v321 = vld [vmem:[#allocation5 + $0x90] sm:$0xff]
        %v322 = vld [vmem:[#allocation5 + $0x98] sm:$0xff]
        %v323 = vld [vmem:[#allocation5 + $0xa0] sm:$0xff]
        %v324 = vld [vmem:[#allocation5 + $0xa8] sm:$0xff]
        %v325 = vld [vmem:[#allocation5 + $0xb0] sm:$0xff]
        %v326 = vld [vmem:[#allocation5 + $0xb8] sm:$0xff]
        %v327 = vld [vmem:[#allocation5 + $0xc0] sm:$0xff]
        %v328 = vld [vmem:[#allocation5 + $0xc8] sm:$0xff]
        %v329 = vld [vmem:[#allocation5 + $0xd0] sm:$0xff]
        %v330 = vld [vmem:[#allocation5 + $0xd8] sm:$0xff]
        %v331 = vld [vmem:[#allocation5 + $0xe0] sm:$0xff]
        %v332 = vld [vmem:[#allocation5 + $0xe8] sm:$0xff]
        %v333 = vld [vmem:[#allocation5 + $0xf0] sm:$0xff]
        %v334 = vld [vmem:[#allocation5 + $0xf8] sm:$0xff]
        %v335 = vld [vmem:[#allocation7] sm:$0x3]
        %v337 = vperm.slane %v335, 0
        %v338 = vperm.slane %v335, 1
        %341 = vmatpush.msra.mxu0 %v333
        %342 = vmatpush.msra.mxu0 %v331
        %343 = vmatpush.msra.mxu0 %v329
        %344 = vmatpush.msra.mxu0 %v327
        %345 = vmatpush.msra.mxu0 %v325
        %346 = vmatpush.msra.mxu0 %v323
        %347 = vmatpush.msra.mxu0 %v321
        %348 = vmatpush.msra.mxu0 %v319
        %349 = vmatpush.msra.mxu0 %v317
        %350 = vmatpush.msra.mxu0 %v315
        %351 = vmatpush.msra.mxu0 %v313
        %352 = vmatpush.msra.mxu0 %v311
        %353 = vmatpush.msra.mxu0 %v309
        %354 = vmatpush.msra.mxu0 %v307
        %355 = vmatpush.msra.mxu0 %v305
        %356 = vmatpush.msra.mxu0 %v303
        %357 = vmatmul.f32.gmra.mxu0 %v295
        %v358 = vpop.f32.mrf.mxu0
        %v359 = vadd.f32 %v337, %v358
        %360 = vmatmul.f32.gmra.mxu0 %v296
        %v361 = vpop.f32.mrf.mxu0
        %v362 = vadd.f32 %v337, %v361
        %363 = vmatmul.f32.gmra.mxu0 %v297
        %v364 = vpop.f32.mrf.mxu0
        %v365 = vadd.f32 %v337, %v364
        %366 = vmatmul.f32.gmra.mxu0 %v298
        %v367 = vpop.f32.mrf.mxu0
        %v368 = vadd.f32 %v337, %v367
        %369 = vmatmul.f32.gmra.mxu0 %v299
        %v370 = vpop.f32.mrf.mxu0
        %v371 = vadd.f32 %v337, %v370
        %372 = vmatmul.f32.gmra.mxu0 %v300
        %v373 = vpop.f32.mrf.mxu0
        %v374 = vadd.f32 %v337, %v373
        %375 = vmatmul.f32.gmra.mxu0 %v301
        %v376 = vpop.f32.mrf.mxu0
        %v377 = vadd.f32 %v337, %v376
        %378 = vmatmul.f32.gmra.mxu0 %v302
        %v379 = vpop.f32.mrf.mxu0
        %v380 = vadd.f32 %v337, %v379
        %381 = vdwg.mxu0
        %382 = vmatpush.msra.mxu0 %v334
        %383 = vmatpush.msra.mxu0 %v332
        %384 = vmatpush.msra.mxu0 %v330
        %385 = vmatpush.msra.mxu0 %v328
        %386 = vmatpush.msra.mxu0 %v326
        %387 = vmatpush.msra.mxu0 %v324
        %388 = vmatpush.msra.mxu0 %v322
        %389 = vmatpush.msra.mxu0 %v320
        %390 = vmatpush.msra.mxu0 %v318
        %391 = vmatpush.msra.mxu0 %v316
        %392 = vmatpush.msra.mxu0 %v314
        %393 = vmatpush.msra.mxu0 %v312
        %394 = vmatpush.msra.mxu0 %v310
        %395 = vmatpush.msra.mxu0 %v308
        %396 = vmatpush.msra.mxu0 %v306
        %397 = vmatpush.msra.mxu0 %v304
        %398 = vmatmul.f32.gmra.mxu0 %v295
        %v399 = vpop.f32.mrf.mxu0
        %v400 = vadd.f32 %v338, %v399
        %401 = vmatmul.f32.gmra.mxu0 %v296
        %v402 = vpop.f32.mrf.mxu0
        %v403 = vadd.f32 %v338, %v402
        %404 = vmatmul.f32.gmra.mxu0 %v297
        %v405 = vpop.f32.mrf.mxu0
        %v406 = vadd.f32 %v338, %v405
        %407 = vmatmul.f32.gmra.mxu0 %v298
        %v408 = vpop.f32.mrf.mxu0
        %v409 = vadd.f32 %v338, %v408
        %410 = vmatmul.f32.gmra.mxu0 %v299
        %v411 = vpop.f32.mrf.mxu0
        %v412 = vadd.f32 %v338, %v411
        %413 = vmatmul.f32.gmra.mxu0 %v300
        %v414 = vpop.f32.mrf.mxu0
        %v415 = vadd.f32 %v338, %v414
        %416 = vmatmul.f32.gmra.mxu0 %v301
        %v417 = vpop.f32.mrf.mxu0
        %v418 = vadd.f32 %v338, %v417
        %419 = vmatmul.f32.gmra.mxu0 %v302
        %v420 = vpop.f32.mrf.mxu0
        %v421 = vadd.f32 %v338, %v420
        %422 = vdwg.mxu0
        %v423 = vmul.f32 %v359, 0.5
        %v424 = vmul.f32 %v400, 0.5
        %v425 = vmul.f32 %v362, 0.5
        %v426 = vmul.f32 %v403, 0.5
        %v427 = vmul.f32 %v365, 0.5
        %v428 = vmul.f32 %v406, 0.5
        %v429 = vmul.f32 %v368, 0.5
        %v430 = vmul.f32 %v409, 0.5
        %v431 = vmul.f32 %v371, 0.5
        %v432 = vmul.f32 %v412, 0.5
        %v433 = vmul.f32 %v374, 0.5
        %v434 = vmul.f32 %v415, 0.5
        %v435 = vmul.f32 %v377, 0.5
        %v436 = vmul.f32 %v418, 0.5
        %v437 = vmul.f32 %v380, 0.5
        %v438 = vmul.f32 %v421, 0.5
        %v439 = vmul.f32 %v359, 0.70710677
        %v440 = vmul.f32 %v400, 0.70710677
        %v441 = vmul.f32 %v362, 0.70710677
        %v442 = vmul.f32 %v403, 0.70710677
        %v443 = vmul.f32 %v365, 0.70710677
        %v444 = vmul.f32 %v406, 0.70710677
        %v445 = vmul.f32 %v368, 0.70710677
        %v446 = vmul.f32 %v409, 0.70710677
        %v447 = vmul.f32 %v371, 0.70710677
        %v448 = vmul.f32 %v412, 0.70710677
        %v449 = vmul.f32 %v374, 0.70710677
        %v450 = vmul.f32 %v415, 0.70710677
        %v451 = vmul.f32 %v377, 0.70710677
        %v452 = vmul.f32 %v418, 0.70710677
        %v453 = vmul.f32 %v380, 0.70710677
        %v454 = vmul.f32 %v421, 0.70710677
        %vm455 = vcmp.ge.f32.partialorder %v439, 0.0
        %vm456 = vcmp.ge.f32.partialorder %v440, 0.0
        %vm457 = vcmp.ge.f32.partialorder %v441, 0.0
        %vm458 = vcmp.ge.f32.partialorder %v442, 0.0
        %vm459 = vcmp.ge.f32.partialorder %v443, 0.0
        %vm460 = vcmp.ge.f32.partialorder %v444, 0.0
        %vm461 = vcmp.ge.f32.partialorder %v445, 0.0
        %vm462 = vcmp.ge.f32.partialorder %v446, 0.0
        %vm463 = vcmp.ge.f32.partialorder %v447, 0.0
        %vm464 = vcmp.ge.f32.partialorder %v448, 0.0
        %vm465 = vcmp.ge.f32.partialorder %v449, 0.0
        %vm466 = vcmp.ge.f32.partialorder %v450, 0.0
        %vm467 = vcmp.ge.f32.partialorder %v451, 0.0
        %vm468 = vcmp.ge.f32.partialorder %v452, 0.0
        %vm469 = vcmp.ge.f32.partialorder %v453, 0.0
        %vm470 = vcmp.ge.f32.partialorder %v454, 0.0
        %v471 = vsel %vm455, 1.0, -1.0
        %v472 = vsel %vm456, 1.0, -1.0
        %v473 = vsel %vm457, 1.0, -1.0
        %v474 = vsel %vm458, 1.0, -1.0
        %v475 = vsel %vm459, 1.0, -1.0
        %v476 = vsel %vm460, 1.0, -1.0
        %v477 = vsel %vm461, 1.0, -1.0
        %v478 = vsel %vm462, 1.0, -1.0
        %v479 = vsel %vm463, 1.0, -1.0
        %v480 = vsel %vm464, 1.0, -1.0
        %v481 = vsel %vm465, 1.0, -1.0
        %v482 = vsel %vm466, 1.0, -1.0
        %v483 = vsel %vm467, 1.0, -1.0
        %v484 = vsel %vm468, 1.0, -1.0
        %v485 = vsel %vm469, 1.0, -1.0
        %v486 = vsel %vm470, 1.0, -1.0
        %v487 = vand.u32 2147483647, %v439
        %v488 = vand.u32 2147483647, %v440
        %v489 = vand.u32 2147483647, %v441
        %v490 = vand.u32 2147483647, %v442
        %v491 = vand.u32 2147483647, %v443
        %v492 = vand.u32 2147483647, %v444
        %v493 = vand.u32 2147483647, %v445
        %v494 = vand.u32 2147483647, %v446
        %v495 = vand.u32 2147483647, %v447
        %v496 = vand.u32 2147483647, %v448
        %v497 = vand.u32 2147483647, %v449
        %v498 = vand.u32 2147483647, %v450
        %v499 = vand.u32 2147483647, %v451
        %v500 = vand.u32 2147483647, %v452
        %v501 = vand.u32 2147483647, %v453
        %v502 = vand.u32 2147483647, %v454
        %v503 = vmul.f32 %v487, 0.3275911
        %v504 = vmul.f32 %v488, 0.3275911
        %v505 = vmul.f32 %v489, 0.3275911
        %v506 = vmul.f32 %v490, 0.3275911
        %v507 = vmul.f32 %v491, 0.3275911
        %v508 = vmul.f32 %v492, 0.3275911
        %v509 = vmul.f32 %v493, 0.3275911
        %v510 = vmul.f32 %v494, 0.3275911
        %v511 = vmul.f32 %v495, 0.3275911
        %v512 = vmul.f32 %v496, 0.3275911
        %v513 = vmul.f32 %v497, 0.3275911
        %v514 = vmul.f32 %v498, 0.3275911
        %v515 = vmul.f32 %v499, 0.3275911
        %v516 = vmul.f32 %v500, 0.3275911
        %v517 = vmul.f32 %v501, 0.3275911
        %v518 = vmul.f32 %v502, 0.3275911
        %v519 = vadd.f32 %v503, 1.0
        %v520 = vadd.f32 %v504, 1.0
        %v521 = vadd.f32 %v505, 1.0
        %v522 = vadd.f32 %v506, 1.0
        %v523 = vadd.f32 %v507, 1.0
        %v524 = vadd.f32 %v508, 1.0
        %v525 = vadd.f32 %v509, 1.0
        %v526 = vadd.f32 %v510, 1.0
        %v527 = vadd.f32 %v511, 1.0
        %v528 = vadd.f32 %v512, 1.0
        %v529 = vadd.f32 %v513, 1.0
        %v530 = vadd.f32 %v514, 1.0
        %v531 = vadd.f32 %v515, 1.0
        %v532 = vadd.f32 %v516, 1.0
        %v533 = vadd.f32 %v517, 1.0
        %v534 = vadd.f32 %v518, 1.0
        %v535 = vrcp.pop %v519
        %v536 = vmul.f32 %v519, %v535
        %v537 = vsub.f32 1.0, %v536
        %v538 = vmul.f32 %v535, %v537
        %v539 = vadd.f32 %v535, %v538
        %vm540 = vweird.f32 %v519
        %vm541 = vweird.f32 %v535
        %vm542 = vmor %vm540, %vm541
        %v543 = vsel %vm542, %v535, %v539
        %v544 = vand.u32 2147483647, %v519
        %vm545 = vcmp.eq.f32.partialorder %v544, 8.507059e+37
        %v546 = vand.u32 %v519, 2147483648
        %v547 = vor.u32 1.1754944e-38, %v546
        %v548 = vsel %vm545, %v547, %v543
        %v549 = vmul.f32 1.0, %v548
        %v550 = vrcp.pop %v520
        %v551 = vmul.f32 %v520, %v550
        %v552 = vsub.f32 1.0, %v551
        %v553 = vmul.f32 %v550, %v552
        %v554 = vadd.f32 %v550, %v553
        %vm555 = vweird.f32 %v520
        %vm556 = vweird.f32 %v550
        %vm557 = vmor %vm555, %vm556
        %v558 = vsel %vm557, %v550, %v554
        %v559 = vand.u32 2147483647, %v520
        %vm560 = vcmp.eq.f32.partialorder %v559, 8.507059e+37
        %v561 = vand.u32 %v520, 2147483648
        %v562 = vor.u32 1.1754944e-38, %v561
        %v563 = vsel %vm560, %v562, %v558
        %v564 = vmul.f32 1.0, %v563
        %v565 = vrcp.pop %v521
        %v566 = vmul.f32 %v521, %v565
        %v567 = vsub.f32 1.0, %v566
        %v568 = vmul.f32 %v565, %v567
        %v569 = vadd.f32 %v565, %v568
        %vm570 = vweird.f32 %v521
        %vm571 = vweird.f32 %v565
        %vm572 = vmor %vm570, %vm571
        %v573 = vsel %vm572, %v565, %v569
        %v574 = vand.u32 2147483647, %v521
        %vm575 = vcmp.eq.f32.partialorder %v574, 8.507059e+37
        %v576 = vand.u32 %v521, 2147483648
        %v577 = vor.u32 1.1754944e-38, %v576
        %v578 = vsel %vm575, %v577, %v573
        %v579 = vmul.f32 1.0, %v578
        %v580 = vrcp.pop %v522
        %v581 = vmul.f32 %v522, %v580
        %v582 = vsub.f32 1.0, %v581
        %v583 = vmul.f32 %v580, %v582
        %v584 = vadd.f32 %v580, %v583
        %vm585 = vweird.f32 %v522
        %vm586 = vweird.f32 %v580
        %vm587 = vmor %vm585, %vm586
        %v588 = vsel %vm587, %v580, %v584
        %v589 = vand.u32 2147483647, %v522
        %vm590 = vcmp.eq.f32.partialorder %v589, 8.507059e+37
        %v591 = vand.u32 %v522, 2147483648
        %v592 = vor.u32 1.1754944e-38, %v591
        %v593 = vsel %vm590, %v592, %v588
        %v594 = vmul.f32 1.0, %v593
        %v595 = vrcp.pop %v523
        %v596 = vmul.f32 %v523, %v595
        %v597 = vsub.f32 1.0, %v596
        %v598 = vmul.f32 %v595, %v597
        %v599 = vadd.f32 %v595, %v598
        %vm600 = vweird.f32 %v523
        %vm601 = vweird.f32 %v595
        %vm602 = vmor %vm600, %vm601
        %v603 = vsel %vm602, %v595, %v599
        %v604 = vand.u32 2147483647, %v523
        %vm605 = vcmp.eq.f32.partialorder %v604, 8.507059e+37
        %v606 = vand.u32 %v523, 2147483648
        %v607 = vor.u32 1.1754944e-38, %v606
        %v608 = vsel %vm605, %v607, %v603
        %v609 = vmul.f32 1.0, %v608
        %v610 = vrcp.pop %v524
        %v611 = vmul.f32 %v524, %v610
        %v612 = vsub.f32 1.0, %v611
        %v613 = vmul.f32 %v610, %v612
        %v614 = vadd.f32 %v610, %v613
        %vm615 = vweird.f32 %v524
        %vm616 = vweird.f32 %v610
        %vm617 = vmor %vm615, %vm616
        %v618 = vsel %vm617, %v610, %v614
        %v619 = vand.u32 2147483647, %v524
        %vm620 = vcmp.eq.f32.partialorder %v619, 8.507059e+37
        %v621 = vand.u32 %v524, 2147483648
        %v622 = vor.u32 1.1754944e-38, %v621
        %v623 = vsel %vm620, %v622, %v618
        %v624 = vmul.f32 1.0, %v623
        %v625 = vrcp.pop %v525
        %v626 = vmul.f32 %v525, %v625
        %v627 = vsub.f32 1.0, %v626
        %v628 = vmul.f32 %v625, %v627
        %v629 = vadd.f32 %v625, %v628
        %vm630 = vweird.f32 %v525
        %vm631 = vweird.f32 %v625
        %vm632 = vmor %vm630, %vm631
        %v633 = vsel %vm632, %v625, %v629
        %v634 = vand.u32 2147483647, %v525
        %vm635 = vcmp.eq.f32.partialorder %v634, 8.507059e+37
        %v636 = vand.u32 %v525, 2147483648
        %v637 = vor.u32 1.1754944e-38, %v636
        %v638 = vsel %vm635, %v637, %v633
        %v639 = vmul.f32 1.0, %v638
        %v640 = vrcp.pop %v526
        %v641 = vmul.f32 %v526, %v640
        %v642 = vsub.f32 1.0, %v641
        %v643 = vmul.f32 %v640, %v642
        %v644 = vadd.f32 %v640, %v643
        %vm645 = vweird.f32 %v526
        %vm646 = vweird.f32 %v640
        %vm647 = vmor %vm645, %vm646
        %v648 = vsel %vm647, %v640, %v644
        %v649 = vand.u32 2147483647, %v526
        %vm650 = vcmp.eq.f32.partialorder %v649, 8.507059e+37
        %v651 = vand.u32 %v526, 2147483648
        %v652 = vor.u32 1.1754944e-38, %v651
        %v653 = vsel %vm650, %v652, %v648
        %v654 = vmul.f32 1.0, %v653
        %v655 = vrcp.pop %v527
        %v656 = vmul.f32 %v527, %v655
        %v657 = vsub.f32 1.0, %v656
        %v658 = vmul.f32 %v655, %v657
        %v659 = vadd.f32 %v655, %v658
        %vm660 = vweird.f32 %v527
        %vm661 = vweird.f32 %v655
        %vm662 = vmor %vm660, %vm661
        %v663 = vsel %vm662, %v655, %v659
        %v664 = vand.u32 2147483647, %v527
        %vm665 = vcmp.eq.f32.partialorder %v664, 8.507059e+37
        %v666 = vand.u32 %v527, 2147483648
        %v667 = vor.u32 1.1754944e-38, %v666
        %v668 = vsel %vm665, %v667, %v663
        %v669 = vmul.f32 1.0, %v668
        %v670 = vrcp.pop %v528
        %v671 = vmul.f32 %v528, %v670
        %v672 = vsub.f32 1.0, %v671
        %v673 = vmul.f32 %v670, %v672
        %v674 = vadd.f32 %v670, %v673
        %vm675 = vweird.f32 %v528
        %vm676 = vweird.f32 %v670
        %vm677 = vmor %vm675, %vm676
        %v678 = vsel %vm677, %v670, %v674
        %v679 = vand.u32 2147483647, %v528
        %vm680 = vcmp.eq.f32.partialorder %v679, 8.507059e+37
        %v681 = vand.u32 %v528, 2147483648
        %v682 = vor.u32 1.1754944e-38, %v681
        %v683 = vsel %vm680, %v682, %v678
        %v684 = vmul.f32 1.0, %v683
        %v685 = vrcp.pop %v529
        %v686 = vmul.f32 %v529, %v685
        %v687 = vsub.f32 1.0, %v686
        %v688 = vmul.f32 %v685, %v687
        %v689 = vadd.f32 %v685, %v688
        %vm690 = vweird.f32 %v529
        %vm691 = vweird.f32 %v685
        %vm692 = vmor %vm690, %vm691
        %v693 = vsel %vm692, %v685, %v689
        %v694 = vand.u32 2147483647, %v529
        %vm695 = vcmp.eq.f32.partialorder %v694, 8.507059e+37
        %v696 = vand.u32 %v529, 2147483648
        %v697 = vor.u32 1.1754944e-38, %v696
        %v698 = vsel %vm695, %v697, %v693
        %v699 = vmul.f32 1.0, %v698
        %v700 = vrcp.pop %v530
        %v701 = vmul.f32 %v530, %v700
        %v702 = vsub.f32 1.0, %v701
        %v703 = vmul.f32 %v700, %v702
        %v704 = vadd.f32 %v700, %v703
        %vm705 = vweird.f32 %v530
        %vm706 = vweird.f32 %v700
        %vm707 = vmor %vm705, %vm706
        %v708 = vsel %vm707, %v700, %v704
        %v709 = vand.u32 2147483647, %v530
        %vm710 = vcmp.eq.f32.partialorder %v709, 8.507059e+37
        %v711 = vand.u32 %v530, 2147483648
        %v712 = vor.u32 1.1754944e-38, %v711
        %v713 = vsel %vm710, %v712, %v708
        %v714 = vmul.f32 1.0, %v713
        %v715 = vrcp.pop %v531
        %v716 = vmul.f32 %v531, %v715
        %v717 = vsub.f32 1.0, %v716
        %v718 = vmul.f32 %v715, %v717
        %v719 = vadd.f32 %v715, %v718
        %vm720 = vweird.f32 %v531
        %vm721 = vweird.f32 %v715
        %vm722 = vmor %vm720, %vm721
        %v723 = vsel %vm722, %v715, %v719
        %v724 = vand.u32 2147483647, %v531
        %vm725 = vcmp.eq.f32.partialorder %v724, 8.507059e+37
        %v726 = vand.u32 %v531, 2147483648
        %v727 = vor.u32 1.1754944e-38, %v726
        %v728 = vsel %vm725, %v727, %v723
        %v729 = vmul.f32 1.0, %v728
        %v730 = vrcp.pop %v532
        %v731 = vmul.f32 %v532, %v730
        %v732 = vsub.f32 1.0, %v731
        %v733 = vmul.f32 %v730, %v732
        %v734 = vadd.f32 %v730, %v733
        %vm735 = vweird.f32 %v532
        %vm736 = vweird.f32 %v730
        %vm737 = vmor %vm735, %vm736
        %v738 = vsel %vm737, %v730, %v734
        %v739 = vand.u32 2147483647, %v532
        %vm740 = vcmp.eq.f32.partialorder %v739, 8.507059e+37
        %v741 = vand.u32 %v532, 2147483648
        %v742 = vor.u32 1.1754944e-38, %v741
        %v743 = vsel %vm740, %v742, %v738
        %v744 = vmul.f32 1.0, %v743
        %v745 = vrcp.pop %v533
        %v746 = vmul.f32 %v533, %v745
        %v747 = vsub.f32 1.0, %v746
        %v748 = vmul.f32 %v745, %v747
        %v749 = vadd.f32 %v745, %v748
        %vm750 = vweird.f32 %v533
        %vm751 = vweird.f32 %v745
        %vm752 = vmor %vm750, %vm751
        %v753 = vsel %vm752, %v745, %v749
        %v754 = vand.u32 2147483647, %v533
        %vm755 = vcmp.eq.f32.partialorder %v754, 8.507059e+37
        %v756 = vand.u32 %v533, 2147483648
        %v757 = vor.u32 1.1754944e-38, %v756
        %v758 = vsel %vm755, %v757, %v753
        %v759 = vmul.f32 1.0, %v758
        %v760 = vrcp.pop %v534
        %v761 = vmul.f32 %v534, %v760
        %v762 = vsub.f32 1.0, %v761
        %v763 = vmul.f32 %v760, %v762
        %v764 = vadd.f32 %v760, %v763
        %vm765 = vweird.f32 %v534
        %vm766 = vweird.f32 %v760
        %vm767 = vmor %vm765, %vm766
        %v768 = vsel %vm767, %v760, %v764
        %v769 = vand.u32 2147483647, %v534
        %vm770 = vcmp.eq.f32.partialorder %v769, 8.507059e+37
        %v771 = vand.u32 %v534, 2147483648
        %v772 = vor.u32 1.1754944e-38, %v771
        %v773 = vsel %vm770, %v772, %v768
        %v774 = vmul.f32 1.0, %v773
        %v775 = vmul.f32 %v549, 1.0614054
        %v776 = vmul.f32 %v564, 1.0614054
        %v777 = vmul.f32 %v579, 1.0614054
        %v778 = vmul.f32 %v594, 1.0614054
        %v779 = vmul.f32 %v609, 1.0614054
        %v780 = vmul.f32 %v624, 1.0614054
        %v781 = vmul.f32 %v639, 1.0614054
        %v782 = vmul.f32 %v654, 1.0614054
        %v783 = vmul.f32 %v669, 1.0614054
        %v784 = vmul.f32 %v684, 1.0614054
        %v785 = vmul.f32 %v699, 1.0614054
        %v786 = vmul.f32 %v714, 1.0614054
        %v787 = vmul.f32 %v729, 1.0614054
        %v788 = vmul.f32 %v744, 1.0614054
        %v789 = vmul.f32 %v759, 1.0614054
        %v790 = vmul.f32 %v774, 1.0614054
        %v791 = vadd.f32 %v775, -1.4531521
        %v792 = vadd.f32 %v776, -1.4531521
        %v793 = vadd.f32 %v777, -1.4531521
        %v794 = vadd.f32 %v778, -1.4531521
        %v795 = vadd.f32 %v779, -1.4531521
        %v796 = vadd.f32 %v780, -1.4531521
        %v797 = vadd.f32 %v781, -1.4531521
        %v798 = vadd.f32 %v782, -1.4531521
        %v799 = vadd.f32 %v783, -1.4531521
        %v800 = vadd.f32 %v784, -1.4531521
        %v801 = vadd.f32 %v785, -1.4531521
        %v802 = vadd.f32 %v786, -1.4531521
        %v803 = vadd.f32 %v787, -1.4531521
        %v804 = vadd.f32 %v788, -1.4531521
        %v805 = vadd.f32 %v789, -1.4531521
        %v806 = vadd.f32 %v790, -1.4531521
        %v807 = vmul.f32 %v791, %v549
        %v808 = vmul.f32 %v792, %v564
        %v809 = vmul.f32 %v793, %v579
        %v810 = vmul.f32 %v794, %v594
        %v811 = vmul.f32 %v795, %v609
        %v812 = vmul.f32 %v796, %v624
        %v813 = vmul.f32 %v797, %v639
        %v814 = vmul.f32 %v798, %v654
        %v815 = vmul.f32 %v799, %v669
        %v816 = vmul.f32 %v800, %v684
        %v817 = vmul.f32 %v801, %v699
        %v818 = vmul.f32 %v802, %v714
        %v819 = vmul.f32 %v803, %v729
        %v820 = vmul.f32 %v804, %v744
        %v821 = vmul.f32 %v805, %v759
        %v822 = vmul.f32 %v806, %v774
        %v823 = vadd.f32 %v807, 1.4214138
        %v824 = vadd.f32 %v808, 1.4214138
        %v825 = vadd.f32 %v809, 1.4214138
        %v826 = vadd.f32 %v810, 1.4214138
        %v827 = vadd.f32 %v811, 1.4214138
        %v828 = vadd.f32 %v812, 1.4214138
        %v829 = vadd.f32 %v813, 1.4214138
        %v830 = vadd.f32 %v814, 1.4214138
        %v831 = vadd.f32 %v815, 1.4214138
        %v832 = vadd.f32 %v816, 1.4214138
        %v833 = vadd.f32 %v817, 1.4214138
        %v834 = vadd.f32 %v818, 1.4214138
        %v835 = vadd.f32 %v819, 1.4214138
        %v836 = vadd.f32 %v820, 1.4214138
        %v837 = vadd.f32 %v821, 1.4214138
        %v838 = vadd.f32 %v822, 1.4214138
        %v839 = vmul.f32 %v823, %v549
        %v840 = vmul.f32 %v824, %v564
        %v841 = vmul.f32 %v825, %v579
        %v842 = vmul.f32 %v826, %v594
        %v843 = vmul.f32 %v827, %v609
        %v844 = vmul.f32 %v828, %v624
        %v845 = vmul.f32 %v829, %v639
        %v846 = vmul.f32 %v830, %v654
        %v847 = vmul.f32 %v831, %v669
        %v848 = vmul.f32 %v832, %v684
        %v849 = vmul.f32 %v833, %v699
        %v850 = vmul.f32 %v834, %v714
        %v851 = vmul.f32 %v835, %v729
        %v852 = vmul.f32 %v836, %v744
        %v853 = vmul.f32 %v837, %v759
        %v854 = vmul.f32 %v838, %v774
        %v855 = vadd.f32 %v839, -0.28449672
        %v856 = vadd.f32 %v840, -0.28449672
        %v857 = vadd.f32 %v841, -0.28449672
        %v858 = vadd.f32 %v842, -0.28449672
        %v859 = vadd.f32 %v843, -0.28449672
        %v860 = vadd.f32 %v844, -0.28449672
        %v861 = vadd.f32 %v845, -0.28449672
        %v862 = vadd.f32 %v846, -0.28449672
        %v863 = vadd.f32 %v847, -0.28449672
        %v864 = vadd.f32 %v848, -0.28449672
        %v865 = vadd.f32 %v849, -0.28449672
        %v866 = vadd.f32 %v850, -0.28449672
        %v867 = vadd.f32 %v851, -0.28449672
        %v868 = vadd.f32 %v852, -0.28449672
        %v869 = vadd.f32 %v853, -0.28449672
        %v870 = vadd.f32 %v854, -0.28449672
        %v871 = vmul.f32 %v855, %v549
        %v872 = vmul.f32 %v856, %v564
        %v873 = vmul.f32 %v857, %v579
        %v874 = vmul.f32 %v858, %v594
        %v875 = vmul.f32 %v859, %v609
        %v876 = vmul.f32 %v860, %v624
        %v877 = vmul.f32 %v861, %v639
        %v878 = vmul.f32 %v862, %v654
        %v879 = vmul.f32 %v863, %v669
        %v880 = vmul.f32 %v864, %v684
        %v881 = vmul.f32 %v865, %v699
        %v882 = vmul.f32 %v866, %v714
        %v883 = vmul.f32 %v867, %v729
        %v884 = vmul.f32 %v868, %v744
        %v885 = vmul.f32 %v869, %v759
        %v886 = vmul.f32 %v870, %v774
        %v887 = vadd.f32 %v871, 0.2548296
        %v888 = vadd.f32 %v872, 0.2548296
        %v889 = vadd.f32 %v873, 0.2548296
        %v890 = vadd.f32 %v874, 0.2548296
        %v891 = vadd.f32 %v875, 0.2548296
        %v892 = vadd.f32 %v876, 0.2548296
        %v893 = vadd.f32 %v877, 0.2548296
        %v894 = vadd.f32 %v878, 0.2548296
        %v895 = vadd.f32 %v879, 0.2548296
        %v896 = vadd.f32 %v880, 0.2548296
        %v897 = vadd.f32 %v881, 0.2548296
        %v898 = vadd.f32 %v882, 0.2548296
        %v899 = vadd.f32 %v883, 0.2548296
        %v900 = vadd.f32 %v884, 0.2548296
        %v901 = vadd.f32 %v885, 0.2548296
        %v902 = vadd.f32 %v886, 0.2548296
        %v903 = vmul.f32 %v887, %v549
        %v904 = vmul.f32 %v888, %v564
        %v905 = vmul.f32 %v889, %v579
        %v906 = vmul.f32 %v890, %v594
        %v907 = vmul.f32 %v891, %v609
        %v908 = vmul.f32 %v892, %v624
        %v909 = vmul.f32 %v893, %v639
        %v910 = vmul.f32 %v894, %v654
        %v911 = vmul.f32 %v895, %v669
        %v912 = vmul.f32 %v896, %v684
        %v913 = vmul.f32 %v897, %v699
        %v914 = vmul.f32 %v898, %v714
        %v915 = vmul.f32 %v899, %v729
        %v916 = vmul.f32 %v900, %v744
        %v917 = vmul.f32 %v901, %v759
        %v918 = vmul.f32 %v902, %v774
        %v919 = vsub.f32 0.0, %v487
        %v920 = vsub.f32 0.0, %v488
        %v921 = vsub.f32 0.0, %v489
        %v922 = vsub.f32 0.0, %v490
        %v923 = vsub.f32 0.0, %v491
        %v924 = vsub.f32 0.0, %v492
        %v925 = vsub.f32 0.0, %v493
        %v926 = vsub.f32 0.0, %v494
        %v927 = vsub.f32 0.0, %v495
        %v928 = vsub.f32 0.0, %v496
        %v929 = vsub.f32 0.0, %v497
        %v930 = vsub.f32 0.0, %v498
        %v931 = vsub.f32 0.0, %v499
        %v932 = vsub.f32 0.0, %v500
        %v933 = vsub.f32 0.0, %v501
        %v934 = vsub.f32 0.0, %v502
        %v935 = vmul.f32 %v919, %v487
        %v936 = vmul.f32 %v920, %v488
        %v937 = vmul.f32 %v921, %v489
        %v938 = vmul.f32 %v922, %v490
        %v939 = vmul.f32 %v923, %v491
        %v940 = vmul.f32 %v924, %v492
        %v941 = vmul.f32 %v925, %v493
        %v942 = vmul.f32 %v926, %v494
        %v943 = vmul.f32 %v927, %v495
        %v944 = vmul.f32 %v928, %v496
        %v945 = vmul.f32 %v929, %v497
        %v946 = vmul.f32 %v930, %v498
        %v947 = vmul.f32 %v931, %v499
        %v948 = vmul.f32 %v932, %v500
        %v949 = vmul.f32 %v933, %v501
        %v950 = vmul.f32 %v934, %v502
        %v951 = vmul.f32 %v935, 1.442695
        %v952 = vpow.pop %v951
        %v953 = vmul.f32 %v936, 1.442695
        %v954 = vpow.pop %v953
        %v955 = vmul.f32 %v937, 1.442695
        %v956 = vpow.pop %v955
        %v957 = vmul.f32 %v938, 1.442695
        %v958 = vpow.pop %v957
        %v959 = vmul.f32 %v939, 1.442695
        %v960 = vpow.pop %v959
        %v961 = vmul.f32 %v940, 1.442695
        %v962 = vpow.pop %v961
        %v963 = vmul.f32 %v941, 1.442695
        %v964 = vpow.pop %v963
        %v965 = vmul.f32 %v942, 1.442695
        %v966 = vpow.pop %v965
        %v967 = vmul.f32 %v943, 1.442695
        %v968 = vpow.pop %v967
        %v969 = vmul.f32 %v944, 1.442695
        %v970 = vpow.pop %v969
        %v971 = vmul.f32 %v945, 1.442695
        %v972 = vpow.pop %v971
        %v973 = vmul.f32 %v946, 1.442695
        %v974 = vpow.pop %v973
        %v975 = vmul.f32 %v947, 1.442695
        %v976 = vpow.pop %v975
        %v977 = vmul.f32 %v948, 1.442695
        %v978 = vpow.pop %v977
        %v979 = vmul.f32 %v949, 1.442695
        %v980 = vpow.pop %v979
        %v981 = vmul.f32 %v950, 1.442695
        %v982 = vpow.pop %v981
        %v983 = vmul.f32 %v903, %v952
        %v984 = vmul.f32 %v904, %v954
        %v985 = vmul.f32 %v905, %v956
        %v986 = vmul.f32 %v906, %v958
        %v987 = vmul.f32 %v907, %v960
        %v988 = vmul.f32 %v908, %v962
        %v989 = vmul.f32 %v909, %v964
        %v990 = vmul.f32 %v910, %v966
        %v991 = vmul.f32 %v911, %v968
        %v992 = vmul.f32 %v912, %v970
        %v993 = vmul.f32 %v913, %v972
        %v994 = vmul.f32 %v914, %v974
        %v995 = vmul.f32 %v915, %v976
        %v996 = vmul.f32 %v916, %v978
        %v997 = vmul.f32 %v917, %v980
        %v998 = vmul.f32 %v918, %v982
        %v999 = vsub.f32 1.0, %v983
        %v1000 = vsub.f32 1.0, %v984
        %v1001 = vsub.f32 1.0, %v985
        %v1002 = vsub.f32 1.0, %v986
        %v1003 = vsub.f32 1.0, %v987
        %v1004 = vsub.f32 1.0, %v988
        %v1005 = vsub.f32 1.0, %v989
        %v1006 = vsub.f32 1.0, %v990
        %v1007 = vsub.f32 1.0, %v991
        %v1008 = vsub.f32 1.0, %v992
        %v1009 = vsub.f32 1.0, %v993
        %v1010 = vsub.f32 1.0, %v994
        %v1011 = vsub.f32 1.0, %v995
        %v1012 = vsub.f32 1.0, %v996
        %v1013 = vsub.f32 1.0, %v997
        %v1014 = vsub.f32 1.0, %v998
        %v1015 = vmul.f32 %v471, %v999
        %v1016 = vmul.f32 %v472, %v1000
        %v1017 = vmul.f32 %v473, %v1001
        %v1018 = vmul.f32 %v474, %v1002
        %v1019 = vmul.f32 %v475, %v1003
        %v1020 = vmul.f32 %v476, %v1004
        %v1021 = vmul.f32 %v477, %v1005
        %v1022 = vmul.f32 %v478, %v1006
        %v1023 = vmul.f32 %v479, %v1007
        %v1024 = vmul.f32 %v480, %v1008
        %v1025 = vmul.f32 %v481, %v1009
        %v1026 = vmul.f32 %v482, %v1010
        %v1027 = vmul.f32 %v483, %v1011
        %v1028 = vmul.f32 %v484, %v1012
        %v1029 = vmul.f32 %v485, %v1013
        %v1030 = vmul.f32 %v486, %v1014
        %v1031 = vadd.f32 %v1015, 1.0
        %v1032 = vadd.f32 %v1016, 1.0
        %v1033 = vadd.f32 %v1017, 1.0
        %v1034 = vadd.f32 %v1018, 1.0
        %v1035 = vadd.f32 %v1019, 1.0
        %v1036 = vadd.f32 %v1020, 1.0
        %v1037 = vadd.f32 %v1021, 1.0
        %v1038 = vadd.f32 %v1022, 1.0
        %v1039 = vadd.f32 %v1023, 1.0
        %v1040 = vadd.f32 %v1024, 1.0
        %v1041 = vadd.f32 %v1025, 1.0
        %v1042 = vadd.f32 %v1026, 1.0
        %v1043 = vadd.f32 %v1027, 1.0
        %v1044 = vadd.f32 %v1028, 1.0
        %v1045 = vadd.f32 %v1029, 1.0
        %v1046 = vadd.f32 %v1030, 1.0
        %v1047 = vmul.f32 %v423, %v1031
        %v1048 = vmul.f32 %v424, %v1032
        %v1049 = vmul.f32 %v425, %v1033
        %v1050 = vmul.f32 %v426, %v1034
        %v1051 = vmul.f32 %v427, %v1035
        %v1052 = vmul.f32 %v428, %v1036
        %v1053 = vmul.f32 %v429, %v1037
        %v1054 = vmul.f32 %v430, %v1038
        %v1055 = vmul.f32 %v431, %v1039
        %v1056 = vmul.f32 %v432, %v1040
        %v1057 = vmul.f32 %v433, %v1041
        %v1058 = vmul.f32 %v434, %v1042
        %v1059 = vmul.f32 %v435, %v1043
        %v1060 = vmul.f32 %v436, %v1044
        %v1061 = vmul.f32 %v437, %v1045
        %v1062 = vmul.f32 %v438, %v1046
        %v1063 = vld [vmem:[#allocation8] sm:$0xff]
        %v1064 = vld [vmem:[#allocation8 + $0x8] sm:$0xff]
        %v1065 = vld [vmem:[#allocation8 + $0x10] sm:$0xff]
        %v1066 = vld [vmem:[#allocation8 + $0x18] sm:$0xff]
        %v1067 = vld [vmem:[#allocation8 + $0x20] sm:$0xff]
        %v1068 = vld [vmem:[#allocation8 + $0x28] sm:$0xff]
        %v1069 = vld [vmem:[#allocation8 + $0x30] sm:$0xff]
        %v1070 = vld [vmem:[#allocation8 + $0x38] sm:$0xff]
        %v1071 = vld [vmem:[#allocation8 + $0x40] sm:$0xff]
        %v1072 = vld [vmem:[#allocation8 + $0x48] sm:$0xff]
        %v1073 = vld [vmem:[#allocation8 + $0x50] sm:$0xff]
        %v1074 = vld [vmem:[#allocation8 + $0x58] sm:$0xff]
        %v1075 = vld [vmem:[#allocation8 + $0x60] sm:$0xff]
        %v1076 = vld [vmem:[#allocation8 + $0x68] sm:$0xff]
        %v1077 = vld [vmem:[#allocation8 + $0x70] sm:$0xff]
        %v1078 = vld [vmem:[#allocation8 + $0x78] sm:$0xff]
        %v1079 = vld [vmem:[#allocation8 + $0x80] sm:$0xff]
        %v1080 = vld [vmem:[#allocation8 + $0x88] sm:$0xff]
        %v1081 = vld [vmem:[#allocation8 + $0x90] sm:$0xff]
        %v1082 = vld [vmem:[#allocation8 + $0x98] sm:$0xff]
        %v1083 = vld [vmem:[#allocation8 + $0xa0] sm:$0xff]
        %v1084 = vld [vmem:[#allocation8 + $0xa8] sm:$0xff]
        %v1085 = vld [vmem:[#allocation8 + $0xb0] sm:$0xff]
        %v1086 = vld [vmem:[#allocation8 + $0xb8] sm:$0xff]
        %v1087 = vld [vmem:[#allocation8 + $0xc0] sm:$0xff]
        %v1088 = vld [vmem:[#allocation8 + $0xc8] sm:$0xff]
        %v1089 = vld [vmem:[#allocation8 + $0xd0] sm:$0xff]
        %v1090 = vld [vmem:[#allocation8 + $0xd8] sm:$0xff]
        %v1091 = vld [vmem:[#allocation8 + $0xe0] sm:$0xff]
        %v1092 = vld [vmem:[#allocation8 + $0xe8] sm:$0xff]
        %v1093 = vld [vmem:[#allocation8 + $0xf0] sm:$0xff]
        %v1094 = vld [vmem:[#allocation8 + $0xf8] sm:$0xff]
        %v1095 = vld [vmem:[%s4] sm:$0x1]
        %v1097 = vperm.slane %v1095, 0
        %1099 = vmatpush.msra.mxu0 %v1078
        %1100 = vmatpush.msra.mxu0 %v1077
        %1101 = vmatpush.msra.mxu0 %v1076
        %1102 = vmatpush.msra.mxu0 %v1075
        %1103 = vmatpush.msra.mxu0 %v1074
        %1104 = vmatpush.msra.mxu0 %v1073
        %1105 = vmatpush.msra.mxu0 %v1072
        %1106 = vmatpush.msra.mxu0 %v1071
        %1107 = vmatpush.msra.mxu0 %v1070
        %1108 = vmatpush.msra.mxu0 %v1069
        %1109 = vmatpush.msra.mxu0 %v1068
        %1110 = vmatpush.msra.mxu0 %v1067
        %1111 = vmatpush.msra.mxu0 %v1066
        %1112 = vmatpush.msra.mxu0 %v1065
        %1113 = vmatpush.msra.mxu0 %v1064
        %1114 = vmatpush.msra.mxu0 %v1063
        %1115 = vmatmul.f32.gmra.mxu0 %v1047
        %v1116 = vpop.f32.mrf.mxu0
        %v1117 = vadd.f32 %v1097, %v1116
        %1118 = vmatmul.f32.gmra.mxu0 %v1049
        %v1119 = vpop.f32.mrf.mxu0
        %v1120 = vadd.f32 %v1097, %v1119
        %1121 = vmatmul.f32.gmra.mxu0 %v1051
        %v1122 = vpop.f32.mrf.mxu0
        %v1123 = vadd.f32 %v1097, %v1122
        %1124 = vmatmul.f32.gmra.mxu0 %v1053
        %v1125 = vpop.f32.mrf.mxu0
        %v1126 = vadd.f32 %v1097, %v1125
        %1127 = vmatmul.f32.gmra.mxu0 %v1055
        %v1128 = vpop.f32.mrf.mxu0
        %v1129 = vadd.f32 %v1097, %v1128
        %1130 = vmatmul.f32.gmra.mxu0 %v1057
        %v1131 = vpop.f32.mrf.mxu0
        %v1132 = vadd.f32 %v1097, %v1131
        %1133 = vmatmul.f32.gmra.mxu0 %v1059
        %v1134 = vpop.f32.mrf.mxu0
        %v1135 = vadd.f32 %v1097, %v1134
        %1136 = vmatmul.f32.gmra.mxu0 %v1061
        %v1137 = vpop.f32.mrf.mxu0
        %v1138 = vadd.f32 %v1097, %v1137
        %1139 = vdwg.mxu0
        %1140 = vmatpush.msra.mxu0 %v1094
        %1141 = vmatpush.msra.mxu0 %v1093
        %1142 = vmatpush.msra.mxu0 %v1092
        %1143 = vmatpush.msra.mxu0 %v1091
        %1144 = vmatpush.msra.mxu0 %v1090
        %1145 = vmatpush.msra.mxu0 %v1089
        %1146 = vmatpush.msra.mxu0 %v1088
        %1147 = vmatpush.msra.mxu0 %v1087
        %1148 = vmatpush.msra.mxu0 %v1086
        %1149 = vmatpush.msra.mxu0 %v1085
        %1150 = vmatpush.msra.mxu0 %v1084
        %1151 = vmatpush.msra.mxu0 %v1083
        %1152 = vmatpush.msra.mxu0 %v1082
        %1153 = vmatpush.msra.mxu0 %v1081
        %1154 = vmatpush.msra.mxu0 %v1080
        %1155 = vmatpush.msra.mxu0 %v1079
        %1156 = vmatmul.f32.gmra.mxu0 %v1048
        %v1157 = vpop.f32.mrf.mxu0
        %v1158 = vadd.f32 %v1117, %v1157
        %1159 = vmatmul.f32.gmra.mxu0 %v1050
        %v1160 = vpop.f32.mrf.mxu0
        %v1161 = vadd.f32 %v1120, %v1160
        %1162 = vmatmul.f32.gmra.mxu0 %v1052
        %v1163 = vpop.f32.mrf.mxu0
        %v1164 = vadd.f32 %v1123, %v1163
        %1165 = vmatmul.f32.gmra.mxu0 %v1054
        %v1166 = vpop.f32.mrf.mxu0
        %v1167 = vadd.f32 %v1126, %v1166
        %1168 = vmatmul.f32.gmra.mxu0 %v1056
        %v1169 = vpop.f32.mrf.mxu0
        %v1170 = vadd.f32 %v1129, %v1169
        %1171 = vmatmul.f32.gmra.mxu0 %v1058
        %v1172 = vpop.f32.mrf.mxu0
        %v1173 = vadd.f32 %v1132, %v1172
        %1174 = vmatmul.f32.gmra.mxu0 %v1060
        %v1175 = vpop.f32.mrf.mxu0
        %v1176 = vadd.f32 %v1135, %v1175
        %1177 = vmatmul.f32.gmra.mxu0 %v1062
        %v1178 = vpop.f32.mrf.mxu0
        %v1179 = vadd.f32 %v1138, %v1178
        %1180 = vdwg.mxu0
        %1181 = vst [vmem:[%s292] sm:$0xff] %v1158
        %1182 = vst [vmem:[%s292 + $0x8] sm:$0xff] %v1161
        %1183 = vst [vmem:[%s292 + $0x10] sm:$0xff] %v1164
        %1184 = vst [vmem:[%s292 + $0x18] sm:$0xff] %v1167
        %1185 = vst [vmem:[%s292 + $0x20] sm:$0xff] %v1170
        %1186 = vst [vmem:[%s292 + $0x28] sm:$0xff] %v1173
        %1187 = vst [vmem:[%s292 + $0x30] sm:$0xff] %v1176
        %1188 = vst [vmem:[%s292 + $0x38] sm:$0xff] %v1179
        %s1189 = sand.u32 %s142, 1
        %s1190 = scalar_lea.sflag [#allocation4], %s1189
        %s1191 = sand.u32 %s142, 1
        %s1192 = smul.addr %s1191, 64
        %s1193 = scalar_lea.vmem [#allocation10], %s1192
        // Predicated region
        $region57: #{tpu_custom_call.1} parent=39 // pred_check
          %p1194 = pneg %p152
        $region58: #{tpu_custom_call.1} parent=39 // pred_check_branch
          %1196 = sbr.rel (%p1194) target = $region60
        $region59: #{tpu_custom_call.1} parent=39 // pred_region
          %s1197 = smul.u32 8, %s24
          %1199 = vsyncadd %s1190, 0
          %s1200 = smul.addr %s1197, 8
          %s1201 = scalar_lea.hbm %s5, %s1200
          %s1202 = sshll.u32 %s1193, 4
          %s1203 = int_to_ptr.vmem [resolvable:$true] %s1202
          %s1204 = sshll.u32 %s1201, 4
          %s1205 = int_to_ptr.hbm [resolvable:$true] %s1204
          %1210 = dma.vmem_to_hbm [thread:$0]  %s1203, 1024, %s1205, %s1190, 128, 128, 8
        $region60: #{tpu_custom_call.1} parent=39 // pred_fallthru
          _
      $region40: #{tpu_custom_call.1} parent=5 // pred_fallthru
        _
      %p1211 = scmp.le.s32.totalorder 2, %s19
      // Predicated region
      $region61: #{tpu_custom_call.1} parent=5 // pred_check
        %p1212 = pneg %p1211
      $region62: #{tpu_custom_call.1} parent=5 // pred_check_branch
        %1214 = sbr.rel (%p1212) target = $region64
      $region63: #{tpu_custom_call.1} parent=5 // pred_region
        %s1215 = ssub.s32 %s19, 2
        // Predicated region
        $region65: #{tpu_custom_call.1} parent=63 // pred_check
          %p1216 = pneg %p158
        $region66: #{tpu_custom_call.1} parent=63 // pred_check_branch
          %1218 = sbr.rel (%p1216) target = $region68
        $region67: #{tpu_custom_call.1} parent=63 // pred_region
          %s1219 = sand.u32 %s143, 1
          %s1220 = scalar_lea.sflag [#allocation4], %s1219
          %s1221 = sand.u32 %s143, 1
          %s1222 = smul.addr %s1221, 64
          %s1223 = scalar_lea.vmem [#allocation10], %s1222
          %1225 = dma.done %s1220, 1024
        $region68: #{tpu_custom_call.1} parent=63 // pred_fallthru
          _
      $region64: #{tpu_custom_call.1} parent=5 // pred_fallthru
        _
    $region6: #{tpu_custom_call.1} parent=1 // loop_footer
      %s23 = sadd.s32 1, %s19
    $region7: #{tpu_custom_call.1} parent=1 // loop_footer_branch
      %18 = sbr.rel target = $region3
    $region8: #{tpu_custom_call.1} parent=1 // loop_exit
      _
    %1226 = vsyncpa [#allocation3], 1
    %s1227 = scalar_lea.sflag [#allocation3], 1
    %1228 = vsyncpa %s1227, 1
    %1229 = vsyncpa [#allocation6], 1
    %1230 = vsyncpa [#allocation9], 1
    %1231 = vsyncpa [#allocation4], 1
    %s1232 = scalar_lea.sflag [#allocation4], 1
    %1233 = vsyncpa %s1232, 1

</llo_original>
